<compile_context>
chip_gen: v6e
topology: v6e:2x2x1
jax: 0.10.0
libtpu: 0.0.40
codegen_flags: <defaults>
</compile_context>

<pallas_src>
import functools

import jax
import jax.numpy as jnp
from jax.experimental import pallas as pl
from jax.experimental.pallas import tpu as pltpu


def _round_up(x, m):
    return ((x + m - 1) // m) * m


def _linear_score_kernel(q_ref, d_ref, wq_ref, wd_ref, b_ref, o_ref, *, sigm_active):
    """One batch tile.

    q_ref : (TB, q_dim)       VMEM (streamed per grid step)
    d_ref : (TB, d_dim)       VMEM (streamed per grid step)
    wq_ref: (q_dim, n_scores) VMEM (resident, constant block index)
    wd_ref: (d_dim, n_scores) VMEM (resident, constant block index)
    b_ref : (1, n_scores)     VMEM (resident)
    o_ref : (TB, n_scores)    VMEM
    """
    # Fused "concat + Linear": cat([q, d], 1) @ W^T == q @ Wq^T + d @ Wd^T  (MXU).
    s = jnp.dot(q_ref[...], wq_ref[...], preferred_element_type=jnp.float32)
    s = s + jnp.dot(d_ref[...], wd_ref[...], preferred_element_type=jnp.float32)
    s = s + b_ref[...].astype(jnp.float32)  # broadcast (1, n_scores) over (TB, n_scores)
    if sigm_active:  # static (trace-time) flag
        s = jax.nn.sigmoid(s)
    o_ref[...] = s.astype(o_ref.dtype)


def _vmem_capacity_bytes():
    """Physical VMEM of the current TPU generation (conservative fallback)."""
    try:
        info = pltpu.get_tpu_info()
        cap = getattr(info, "vmem_capacity_bytes", None)
        if cap:
            return int(cap)
    except Exception:
        pass
    return 64 * 1024 * 1024  # v7x-sized fallback: safe on every generation


def _choose_batch_tile(batch, q_dim, d_dim, n_scores, itemsize):
    """Generation-aware batch tile.

    Accounts for 128-lane padding of the streamed blocks and the resident
    weight/bias/output footprints.  Targets >= ~4 MiB of streamed Q+D per grid
    step (so the kernel is HBM-bound, not step-overhead bound) while keeping
    >= ~8 grid blocks when the batch is large (megacore + pipeline depth).
    """
    vmem_cap = _vmem_capacity_bytes()
    # ~5/8 of physical VMEM for the streams: ~80 MiB on v5e/v6e, ~40 MiB on v7x.
    budget = min(80 << 20, max(16 << 20, (vmem_cap * 5) // 8))

    # Lane-padded per-row footprint of one streamed Q+D row and one output row.
    row_bytes = (_round_up(q_dim, 128) + _round_up(d_dim, 128)) * itemsize
    out_row_bytes = _round_up(n_scores, 128) * 4

    # Resident weights + bias (assume double-buffered, to be safe).
    w_bytes = 2 * ((_round_up(q_dim, 8) + _round_up(d_dim, 8))
                   * _round_up(n_scores, 128) * itemsize
                   + 8 * _round_up(n_scores, 128) * 4)
    stream_budget = max(1 << 20, budget - w_bytes)

    # Largest tile whose double-buffered Q + D + out fits the budget.
    tb_cap = stream_budget // max(1, 2 * (row_bytes + out_row_bytes))
    if tb_cap >= batch:
        return batch  # single block == full array dims: always layout-legal

    # >= ~4 MiB streamed per step, but keep >= ~8 grid blocks when possible.
    min_rows = pl.cdiv(4 << 20, row_bytes)
    tb = min(tb_cap, max(min_rows, pl.cdiv(batch, 8)))
    tb = max(128, (tb // 128) * 128)  # MXU/sublane aligned (covers f32 and bf16)
    if tb >= batch:
        return batch
    return tb


def linear_score_forward(questions, documents, weight, bias, *,
                         sigm_active=False, block_b=None):
    """Pallas implementation of LinearScore.forward((questions, documents)).

    questions: (B, q_dim)  float32 or bfloat16
    documents: (B, d_dim)  same dtype as questions
    weight:    (n_scores, q_dim + d_dim) float32   (nn.Linear weight)
    bias:      (n_scores,) float32                 (nn.Linear bias)
    returns:   (B, n_scores) float32
    """
    B, q_dim = questions.shape
    B2, d_dim = documents.shape
    assert B == B2, "questions / documents batch mismatch"
    assert questions.dtype == documents.dtype, "questions / documents dtype mismatch"
    n_scores = weight.shape[0]
    assert weight.shape == (n_scores, q_dim + d_dim)
    assert bias.shape == (n_scores,)

    in_dtype = questions.dtype
    itemsize = jnp.dtype(in_dtype).itemsize

    # Split the Linear weight so the concat never materializes.  Only these
    # tiny weights are cast to the streaming dtype (never the Q/D streams).
    wq = weight[:, :q_dim].T.astype(in_dtype)   # (q_dim, n_scores)
    wd = weight[:, q_dim:].T.astype(in_dtype)   # (d_dim, n_scores)
    b2d = bias.reshape(1, n_scores).astype(jnp.float32)

    min_sublane = {4: 8, 2: 16, 1: 32}.get(itemsize, 8)
    if block_b is None:
        tb = _choose_batch_tile(B, q_dim, d_dim, n_scores, itemsize)
    else:
        tb = int(block_b)
        assert tb == B or tb % min_sublane == 0, (
            f"block_b must be a multiple of {min_sublane} for dtype {in_dtype} or equal B")

    # Non-divisible grid: the tail block's out-of-range rows are masked on the
    # output writeback, so no jnp.pad (and no extra HBM pass) is needed.
    num_blocks = pl.cdiv(B, tb)

    flops = 2 * B * (q_dim + d_dim) * n_scores
    bytes_accessed = (B * (q_dim + d_dim)) * itemsize \
        + (q_dim + d_dim) * n_scores * itemsize \
        + n_scores * 4 + B * n_scores * 4
    cost = pl.CostEstimate(
        flops=flops,
        transcendentals=(B * n_scores if sigm_active else 0),
        bytes_accessed=bytes_accessed,
    )

    kernel = functools.partial(_linear_score_kernel, sigm_active=sigm_active)
    vmem_limit = min(100 << 20, (_vmem_capacity_bytes() * 7) // 8)

    return pl.pallas_call(
        kernel,
        out_shape=jax.ShapeDtypeStruct((B, n_scores), jnp.float32),
        grid_spec=pl.GridSpec(
            grid=(num_blocks,),
            in_specs=[
                pl.BlockSpec((tb, q_dim), lambda i: (i, 0)),          # Q stream
                pl.BlockSpec((tb, d_dim), lambda i: (i, 0)),          # D stream
                pl.BlockSpec((q_dim, n_scores), lambda i: (0, 0)),    # Wq resident
                pl.BlockSpec((d_dim, n_scores), lambda i: (0, 0)),    # Wd resident
                pl.BlockSpec((1, n_scores), lambda i: (0, 0)),        # bias resident
            ],
            out_specs=pl.BlockSpec((tb, n_scores), lambda i: (i, 0)),
        ),
        compiler_params=pltpu.CompilerParams(
            dimension_semantics=("parallel",),      # batch tiles are independent
            vmem_limit_bytes=vmem_limit,
        ),
        cost_estimate=cost,
    )(questions, documents, wq, wd, b2d)


def reference_forward(questions, documents, weight, bias, sigm_active=False):
    """Pure-JAX reference mirroring the PyTorch module."""
    x = jnp.concatenate([questions.astype(jnp.float32),
                         documents.astype(jnp.float32)], axis=1)
    out = jnp.dot(x, weight.T) + bias
    if sigm_active:
        out = jax.nn.sigmoid(out)
    return out


if __name__ == "__main__":
    # Small, module-consistent shapes: batch=20, q_dim=32, d_dim=48.
    B, QD, DD = 20, 32, 48
    key = jax.random.PRNGKey(0)
    kq, kd, kw1, kb1, kw2, kb2 = jax.random.split(key, 6)

    questions = jax.random.normal(kq, (B, QD), dtype=jnp.float32)
    documents = jax.random.normal(kd, (B, DD), dtype=jnp.float32)

    fan_in = QD + DD
    bound = 1.0 / jnp.sqrt(fan_in)
    # n_scores = 1, no sigmoid
    w1 = jax.random.uniform(kw1, (1, fan_in), jnp.float32, -bound, bound)
    b1 = jax.random.uniform(kb1, (1,), jnp.float32, -bound, bound)
    # n_scores = 2, sigmoid active
    w2 = jax.random.uniform(kw2, (2, fan_in), jnp.float32, -bound, bound)
    b2 = jax.random.uniform(kb2, (2,), jnp.float32, -bound, bound)

    # Test 1: f32, n_scores=1, no sigmoid, block_b=8 -> grid of 3 with a
    # partial (masked) tail block and NO wrapper-side padding.
    out1 = jax.block_until_ready(
        linear_score_forward(questions, documents, w1, b1, sigm_active=False, block_b=8))
    ref1 = reference_forward(questions, documents, w1, b1, sigm_active=False)
    assert out1.shape == (B, 1)
    assert jnp.allclose(out1, ref1, rtol=1e-5, atol=1e-5), (out1, ref1)

    # Test 2: f32, n_scores=2, sigmoid active, partial tail block.
    out2 = jax.block_until_ready(
        linear_score_forward(questions, documents, w2, b2, sigm_active=True, block_b=8))
    ref2 = reference_forward(questions, documents, w2, b2, sigm_active=True)
    assert out2.shape == (B, 2)
    assert jnp.allclose(out2, ref2, rtol=1e-5, atol=1e-5), (out2, ref2)

    # Test 3: inputs arrive bf16 natively (no wrapper cast); auto tile picks a
    # single full-array block. f32 accumulation, loose tolerance vs f32 ref.
    q_bf16 = questions.astype(jnp.bfloat16)
    d_bf16 = documents.astype(jnp.bfloat16)
    out3 = jax.block_until_ready(
        linear_score_forward(q_bf16, d_bf16, w1, b1, sigm_active=False))
    assert out3.shape == (B, 1)
    assert jnp.allclose(out3, ref1, rtol=1e-1, atol=1e-1), (out3, ref1)

    # Test 4: f32, auto (generation-aware) tile selection -> single block here.
    out4 = jax.block_until_ready(
        linear_score_forward(questions, documents, w2, b2, sigm_active=True))
    assert out4.shape == (B, 2)
    assert jnp.allclose(out4, ref2, rtol=1e-5, atol=1e-5), (out4, ref2)

    print("KERNEL_OK")
</pallas_src>

<mosaic_0001>
module attributes {stable_mosaic.version = 11 : i64} {
  func.func @_linear_score_kernel(%arg0: i32, %arg1: memref<8x32xf32, #tpu.memory_space<vmem>>, %arg2: memref<8x48xf32, #tpu.memory_space<vmem>>, %arg3: memref<32x1xf32, #tpu.memory_space<vmem>>, %arg4: memref<48x1xf32, #tpu.memory_space<vmem>>, %arg5: memref<1x1xf32, #tpu.memory_space<vmem>>, %arg6: memref<8x1xf32, #tpu.memory_space<vmem>>) attributes {dimension_semantics = [#tpu.dimension_semantics<parallel>], iteration_bounds = array<i64: 3>, scalar_prefetch = 0 : i64, scratch_operands = 0 : i64, tpu.core_type = #tpu.core_type<tc>, window_params = [{transform_indices = @transform_0, window_bounds = array<i64: 8, 32>}, {transform_indices = @transform_1, window_bounds = array<i64: 8, 48>}, {pipeline_mode = #tpu.pipeline_mode<synchronous>, transform_indices = @transform_2, window_bounds = array<i64: 32, 1>}, {pipeline_mode = #tpu.pipeline_mode<synchronous>, transform_indices = @transform_3, window_bounds = array<i64: 48, 1>}, {pipeline_mode = #tpu.pipeline_mode<synchronous>, transform_indices = @transform_4, window_bounds = array<i64: 1, 1>}, {transform_indices = @transform_5, window_bounds = array<i64: 8, 1>}]} {
    %c0 = arith.constant 0 : index
    %c0_0 = arith.constant 0 : index
    %0 = vector.load %arg1[%c0, %c0_0] : memref<8x32xf32, #tpu.memory_space<vmem>>, vector<8x32xf32>
    %c0_1 = arith.constant 0 : index
    %c0_2 = arith.constant 0 : index
    %1 = vector.load %arg3[%c0_1, %c0_2] : memref<32x1xf32, #tpu.memory_space<vmem>>, vector<32x1xf32>
    %cst = arith.constant dense<0.000000e+00> : vector<8x1xf32>
    %2 = tpu.matmul %0, %1, %cst {dimension_numbers = #tpu.dot_dimension_numbers<[1], [0], [0], [1], [0, 0, 1, 1], [], []>} : vector<8x32xf32>, vector<32x1xf32>, vector<8x1xf32> -> vector<8x1xf32>
    %c0_3 = arith.constant 0 : index
    %c0_4 = arith.constant 0 : index
    %3 = vector.load %arg2[%c0_3, %c0_4] : memref<8x48xf32, #tpu.memory_space<vmem>>, vector<8x48xf32>
    %c0_5 = arith.constant 0 : index
    %c0_6 = arith.constant 0 : index
    %4 = vector.load %arg4[%c0_5, %c0_6] : memref<48x1xf32, #tpu.memory_space<vmem>>, vector<48x1xf32>
    %cst_7 = arith.constant dense<0.000000e+00> : vector<8x1xf32>
    %5 = tpu.matmul %3, %4, %cst_7 {dimension_numbers = #tpu.dot_dimension_numbers<[1], [0], [0], [1], [0, 0, 1, 1], [], []>} : vector<8x48xf32>, vector<48x1xf32>, vector<8x1xf32> -> vector<8x1xf32>
    %6 = arith.addf %2, %5 : vector<8x1xf32>
    %c0_8 = arith.constant 0 : index
    %c0_9 = arith.constant 0 : index
    %7 = vector.load %arg5[%c0_8, %c0_9] : memref<1x1xf32, #tpu.memory_space<vmem>>, vector<1x1xf32>
    %8 = vector.broadcast %7 : vector<1x1xf32> to vector<8x1xf32>
    %9 = arith.addf %6, %8 : vector<8x1xf32>
    %c0_10 = arith.constant 0 : index
    %c0_11 = arith.constant 0 : index
    %10 = vector.load %arg6[%c0_10, %c0_11] : memref<8x1xf32, #tpu.memory_space<vmem>>, vector<8x1xf32>
    tpu.vector_store %arg6[%c0_10, %c0_11], %9 {strides = array<i32>} : memref<8x1xf32, #tpu.memory_space<vmem>>, vector<8x1xf32>,
    return
  }
  func.func @transform_0(%arg0: i32) -> (i32, i32) {
    %c0_i32 = arith.constant 0 : i32
    %c0_i32_0 = arith.constant 0 : i32
    return %arg0, %c0_i32 : i32, i32
  }
  func.func @transform_1(%arg0: i32) -> (i32, i32) {
    %c0_i32 = arith.constant 0 : i32
    %c0_i32_0 = arith.constant 0 : i32
    return %arg0, %c0_i32 : i32, i32
  }
  func.func @transform_2(%arg0: i32) -> (i32, i32) {
    %c0_i32 = arith.constant 0 : i32
    %c0_i32_0 = arith.constant 0 : i32
    %c0_i32_1 = arith.constant 0 : i32
    return %c0_i32, %c0_i32_0 : i32, i32
  }
  func.func @transform_3(%arg0: i32) -> (i32, i32) {
    %c0_i32 = arith.constant 0 : i32
    %c0_i32_0 = arith.constant 0 : i32
    %c0_i32_1 = arith.constant 0 : i32
    return %c0_i32, %c0_i32_0 : i32, i32
  }
  func.func @transform_4(%arg0: i32) -> (i32, i32) {
    %c0_i32 = arith.constant 0 : i32
    %c0_i32_0 = arith.constant 0 : i32
    %c0_i32_1 = arith.constant 0 : i32
    return %c0_i32, %c0_i32_0 : i32, i32
  }
  func.func @transform_5(%arg0: i32) -> (i32, i32) {
    %c0_i32 = arith.constant 0 : i32
    %c0_i32_0 = arith.constant 0 : i32
    return %arg0, %c0_i32 : i32, i32
  }
}

</mosaic_0001>

<llo_original>
// kernel: tpu_custom_call.1
$region0: #{tpu_custom_call.1}
  #allocation0 [shape = 'u32[]', space=smem, size = 0x4, offset = 0x4, fixed_abs, tag = 'smem constant byte address 0x4 - core index']
  #allocation1 [shape = 'u32[144,128]{1,0:T(1,128)}', space=vmem, size = 0x12000, scoped, tag = 'internal scratch']
  #allocation2 [shape = 'f32[1,1]{1,0:T(1,128)S(1)}', space=vmem, size = 0x200, scoped, tag = 'scoped memory for tpu_custom_call.1']
  %s0 = inlined_call_operand.vmem [shape: f32[20,32], index: 0, kind: input, shape index: {}]
  %s1 = inlined_call_operand.vmem [shape: f32[20,48], index: 1, kind: input, shape index: {}]
  %s2 = inlined_call_operand.vmem [shape: f32[32,1], index: 2, kind: input, shape index: {}]
  %s3 = inlined_call_operand.vmem [shape: f32[48,1], index: 3, kind: input, shape index: {}]
  %s4 = inlined_call_operand.<no memory space> [shape: f32[1,1], index: 4, kind: input, shape index: {}]
  %s5 = inlined_call_operand.vmem [shape: f32[20,1], index: 5, kind: output, shape index: {}]
  %s6 = sld [smem:[#allocation0]]
  $region53: #{tpu_custom_call.1} parent=0
    _
  %s8 = ssub.s32 1, %s6
  %s9 = scalar_select 0, %s8, %s6
  %v10 = vstv %s4
  %11 = vst [vmem:[#allocation2] sm:$0x1] %v10
  loop: start=0, step=1, limit=5
  $region2: #{tpu_custom_call.1} parent=0 // loop_pre_header
    _
  $region3: #{tpu_custom_call.1} parent=0 // loop_header
    %s13 = sphi 0, %s17
    %p14 = scmp.ge.s32.totalorder %s13, 5
    %s23 = sphi 0, %s25
    %s26 = sphi 0, %s23
    %s27 = sphi 0, %s26
    %s43 = sphi 0, %s27
    %s49 = sphi 0, %s51
    %s52 = sphi 0, %s49
    %s53 = sphi 0, %s52
    %s69 = sphi 0, %s53
    %s73 = sphi 0, %s73
    %s75 = sphi 0, %s73
    %s76 = sphi 0, %s75
    %s90 = sphi 0, %s76
    %s94 = sphi 0, %s94
    %s96 = sphi 0, %s94
    %s97 = sphi 0, %s96
    %s111 = sphi 0, %s97
    %s115 = sphi 0, %s115
    %s117 = sphi 0, %s115
    %s118 = sphi 0, %s117
    %s132 = sphi 0, %s118
    %s138 = sphi 0, %s140
    %s141 = sphi 0, %s138
    %s142 = sphi 0, %s141
    %s158 = sphi 0, %s142
  $region4: #{tpu_custom_call.1} parent=0 // loop_header_branch
    %16 = sbr.rel (%p14) target = $region8
  $region5: #{tpu_custom_call.1} parent=0 // loop_body
    %s18 = ssub.s32 %s13, 1
    %s19 = ssub.s32 %s13, 2
    %s20 = sadd.s32 %s13, 1
    %s21 = ssub.s32 %s13, %s20
    %p22 = scmp.eq.s32.totalorder %s21, 0
    %s24 = sadd.s32 %s23, 1
    %s25 = scalar_select %p22, %s23, %s24
    %p28 = pneg %p22
    %p29 = scmp.eq.s32.totalorder %s13, 2
    %p30 = por %p28, %p29
    %p31 = scmp.ne.s32.totalorder %s23, %s26
    %p32 = scmp.eq.s32.totalorder %s13, 0
    %p33 = por %p31, %p32
    %p34 = scmp.ne.s32.totalorder %s23, %s26
    %p35 = scmp.eq.s32.totalorder %s18, 2
    %p36 = por %p34, %p35
    %p37 = scmp.ne.s32.totalorder %s26, %s27
    %p38 = scmp.eq.s32.totalorder %s18, 0
    %p39 = por %p37, %p38
    %p40 = scmp.ne.s32.totalorder %s26, %s27
    %p41 = scmp.eq.s32.totalorder %s19, 2
    %p42 = por %p40, %p41
    %p44 = scmp.ne.s32.totalorder %s27, %s43
    %p45 = scmp.eq.s32.totalorder %s19, 0
    %p46 = por %p44, %p45
    %s47 = ssub.s32 %s13, %s20
    %p48 = scmp.eq.s32.totalorder %s47, 0
    %s50 = sadd.s32 %s49, 1
    %s51 = scalar_select %p48, %s49, %s50
    %p54 = pneg %p48
    %p55 = scmp.eq.s32.totalorder %s13, 2
    %p56 = por %p54, %p55
    %p57 = scmp.ne.s32.totalorder %s49, %s52
    %p58 = scmp.eq.s32.totalorder %s13, 0
    %p59 = por %p57, %p58
    %p60 = scmp.ne.s32.totalorder %s49, %s52
    %p61 = scmp.eq.s32.totalorder %s18, 2
    %p62 = por %p60, %p61
    %p63 = scmp.ne.s32.totalorder %s52, %s53
    %p64 = scmp.eq.s32.totalorder %s18, 0
    %p65 = por %p63, %p64
    %p66 = scmp.ne.s32.totalorder %s52, %s53
    %p67 = scmp.eq.s32.totalorder %s19, 2
    %p68 = por %p66, %p67
    %p70 = scmp.ne.s32.totalorder %s53, %s69
    %p71 = scmp.eq.s32.totalorder %s19, 0
    %p72 = por %p70, %p71
    %s74 = sadd.s32 %s73, 1
    %p77 = scmp.eq.s32.totalorder %s13, 2
    %p78 = scmp.ne.s32.totalorder %s73, %s75
    %p79 = scmp.eq.s32.totalorder %s13, 0
    %p80 = por %p78, %p79
    %p81 = scmp.ne.s32.totalorder %s73, %s75
    %p82 = scmp.eq.s32.totalorder %s18, 2
    %p83 = por %p81, %p82
    %p84 = scmp.ne.s32.totalorder %s75, %s76
    %p85 = scmp.eq.s32.totalorder %s18, 0
    %p86 = por %p84, %p85
    %p87 = scmp.ne.s32.totalorder %s75, %s76
    %p88 = scmp.eq.s32.totalorder %s19, 2
    %p89 = por %p87, %p88
    %p91 = scmp.ne.s32.totalorder %s76, %s90
    %p92 = scmp.eq.s32.totalorder %s19, 0
    %p93 = por %p91, %p92
    %s95 = sadd.s32 %s94, 1
    %p98 = scmp.eq.s32.totalorder %s13, 2
    %p99 = scmp.ne.s32.totalorder %s94, %s96
    %p100 = scmp.eq.s32.totalorder %s13, 0
    %p101 = por %p99, %p100
    %p102 = scmp.ne.s32.totalorder %s94, %s96
    %p103 = scmp.eq.s32.totalorder %s18, 2
    %p104 = por %p102, %p103
    %p105 = scmp.ne.s32.totalorder %s96, %s97
    %p106 = scmp.eq.s32.totalorder %s18, 0
    %p107 = por %p105, %p106
    %p108 = scmp.ne.s32.totalorder %s96, %s97
    %p109 = scmp.eq.s32.totalorder %s19, 2
    %p110 = por %p108, %p109
    %p112 = scmp.ne.s32.totalorder %s97, %s111
    %p113 = scmp.eq.s32.totalorder %s19, 0
    %p114 = por %p112, %p113
    %s116 = sadd.s32 %s115, 1
    %p119 = scmp.eq.s32.totalorder %s13, 2
    %p120 = scmp.ne.s32.totalorder %s115, %s117
    %p121 = scmp.eq.s32.totalorder %s13, 0
    %p122 = por %p120, %p121
    %p123 = scmp.ne.s32.totalorder %s115, %s117
    %p124 = scmp.eq.s32.totalorder %s18, 2
    %p125 = por %p123, %p124
    %p126 = scmp.ne.s32.totalorder %s117, %s118
    %p127 = scmp.eq.s32.totalorder %s18, 0
    %p128 = por %p126, %p127
    %p129 = scmp.ne.s32.totalorder %s117, %s118
    %p130 = scmp.eq.s32.totalorder %s19, 2
    %p131 = por %p129, %p130
    %p133 = scmp.ne.s32.totalorder %s118, %s132
    %p134 = scmp.eq.s32.totalorder %s19, 0
    %p135 = por %p133, %p134
    %s136 = ssub.s32 %s13, %s20
    %p137 = scmp.eq.s32.totalorder %s136, 0
    %s139 = sadd.s32 %s138, 1
    %s140 = scalar_select %p137, %s138, %s139
    %p143 = pneg %p137
    %p144 = scmp.eq.s32.totalorder %s13, 2
    %p145 = por %p143, %p144
    %p146 = scmp.ne.s32.totalorder %s138, %s141
    %p147 = scmp.eq.s32.totalorder %s13, 0
    %p148 = por %p146, %p147
    %p149 = scmp.ne.s32.totalorder %s138, %s141
    %p150 = scmp.eq.s32.totalorder %s18, 2
    %p151 = por %p149, %p150
    %p152 = scmp.ne.s32.totalorder %s141, %s142
    %p153 = scmp.eq.s32.totalorder %s18, 0
    %p154 = por %p152, %p153
    %p155 = scmp.ne.s32.totalorder %s141, %s142
    %p156 = scmp.eq.s32.totalorder %s19, 2
    %p157 = por %p155, %p156
    %p159 = scmp.ne.s32.totalorder %s142, %s158
    %p160 = scmp.eq.s32.totalorder %s19, 0
    %p161 = por %p159, %p160
    %p162 = scmp.le.s32.totalorder 1, %s13
    %p163 = scmp.lt.s32.totalorder %s13, 4
    %p164 = pnand %p162, %p163
    %p165 = pneg %p164
    // Predicated region
    $region9: #{tpu_custom_call.1} parent=5 // pred_check
      _
    $region10: #{tpu_custom_call.1} parent=5 // pred_check_branch
      %167 = sbr.rel (%p164) target = $region12
    $region11: #{tpu_custom_call.1} parent=5 // pred_region
      %s168 = ssub.s32 %s13, 1
      // Predicated region
      $region13: #{tpu_custom_call.1} parent=11 // pred_check
        %p169 = pneg %p86
      $region14: #{tpu_custom_call.1} parent=11 // pred_check_branch
        %171 = sbr.rel (%p169) target = $region16
      $region15: #{tpu_custom_call.1} parent=11 // pred_region
        _
      $region16: #{tpu_custom_call.1} parent=11 // pred_fallthru
        _
      // Predicated region
      $region17: #{tpu_custom_call.1} parent=11 // pred_check
        %p172 = pneg %p107
      $region18: #{tpu_custom_call.1} parent=11 // pred_check_branch
        %174 = sbr.rel (%p172) target = $region20
      $region19: #{tpu_custom_call.1} parent=11 // pred_region
        _
      $region20: #{tpu_custom_call.1} parent=11 // pred_fallthru
        _
      // Predicated region
      $region21: #{tpu_custom_call.1} parent=11 // pred_check
        %p175 = pneg %p128
      $region22: #{tpu_custom_call.1} parent=11 // pred_check_branch
        %177 = sbr.rel (%p175) target = $region24
      $region23: #{tpu_custom_call.1} parent=11 // pred_region
        _
      $region24: #{tpu_custom_call.1} parent=11 // pred_fallthru
        _
    $region12: #{tpu_custom_call.1} parent=5 // pred_fallthru
      _
    %p178 = scmp.lt.s32.totalorder %s13, 3
    // Predicated region
    $region25: #{tpu_custom_call.1} parent=5 // pred_check
      %p179 = pneg %p178
    $region26: #{tpu_custom_call.1} parent=5 // pred_check_branch
      %181 = sbr.rel (%p179) target = $region28
    $region27: #{tpu_custom_call.1} parent=5 // pred_region
      // Predicated region
      $region29: #{tpu_custom_call.1} parent=27 // pred_check
        %p182 = pneg %p33
      $region30: #{tpu_custom_call.1} parent=27 // pred_check_branch
        %184 = sbr.rel (%p182) target = $region32
      $region31: #{tpu_custom_call.1} parent=27 // pred_region
        %p185 = scmp.lt.s32.totalorder %s13, 2
        %s186 = scalar_select %p185, %s13, 2
        %s187 = smul.addr %s186, 8
        %s188 = scalar_lea.vmem %s0, %s187
      $region32: #{tpu_custom_call.1} parent=27 // pred_fallthru
        _
      // Predicated region
      $region33: #{tpu_custom_call.1} parent=27 // pred_check
        %p189 = pneg %p59
      $region34: #{tpu_custom_call.1} parent=27 // pred_check_branch
        %191 = sbr.rel (%p189) target = $region36
      $region35: #{tpu_custom_call.1} parent=27 // pred_region
        %p192 = scmp.lt.s32.totalorder %s13, 2
        %s193 = scalar_select %p192, %s13, 2
        %s194 = smul.addr %s193, 8
        %s195 = scalar_lea.vmem %s1, %s194
      $region36: #{tpu_custom_call.1} parent=27 // pred_fallthru
        _
    $region28: #{tpu_custom_call.1} parent=5 // pred_fallthru
      _
    %p196 = scmp.le.s32.totalorder 1, %s13
    %p197 = scmp.lt.s32.totalorder %s13, 4
    %p198 = pnand %p196, %p197
    %p199 = pneg %p198
    // Predicated region
    $region37: #{tpu_custom_call.1} parent=5 // pred_check
      _
    $region38: #{tpu_custom_call.1} parent=5 // pred_check_branch
      %201 = sbr.rel (%p198) target = $region40
    $region39: #{tpu_custom_call.1} parent=5 // pred_region
      %s202 = ssub.s32 %s13, 1
      %p203 = scmp.lt.s32.totalorder %s18, 2
      %s204 = scalar_select %p203, %s18, 2
      %s205 = smul.addr %s204, 8
      %s206 = scalar_lea.vmem %s0, %s205
      %p207 = pneg %p39
      %p208 = pneg %p36
      %p209 = scmp.lt.s32.totalorder %s18, 2
      %s210 = scalar_select %p209, %s18, 2
      %s211 = smul.addr %s210, 8
      %s212 = scalar_lea.vmem %s1, %s211
      %p213 = pneg %p65
      %p214 = pneg %p62
      %p215 = pneg %p86
      %p216 = pneg %p83
      %p217 = pneg %p107
      %p218 = pneg %p104
      %p219 = pneg %p128
      %p220 = pneg %p125
      %p221 = pneg %p154
      %p222 = pneg %p151
      %p223 = scmp.lt.s32.totalorder %s18, 2
      %s224 = scalar_select %p223, %s18, 2
      %s225 = smul.addr %s224, 8
      %s226 = scalar_lea.vmem %s5, %s225
      %p227 = scmp.lt.s32.totalorder %s18, 2
      %s228 = scalar_select %p227, %s18, 2
      %s229 = smul.addr %s228, 8
      %s230 = scalar_lea.vmem %s0, %s229
      %p231 = scmp.lt.s32.totalorder %s18, 2
      %s232 = scalar_select %p231, %s18, 2
      %s233 = smul.addr %s232, 8
      %s234 = scalar_lea.vmem %s1, %s233
      %p235 = scmp.lt.s32.totalorder %s18, 2
      %s236 = scalar_select %p235, %s18, 2
      %s237 = smul.addr %s236, 8
      %s238 = scalar_lea.vmem %s5, %s237
      %v239 = vld [vmem:[%s230] sm:$0xff]
      %v240 = vld [vmem:[%s2] sm:$0xff]
      %v241 = vld [vmem:[%s2 + $0x8] sm:$0xff]
      %v242 = vld [vmem:[%s2 + $0x10] sm:$0xff]
      %v243 = vld [vmem:[%s2 + $0x18] sm:$0xff]
      %v244 = vld [vmem:[%s234] sm:$0xff]
      %v245 = vld [vmem:[%s3] sm:$0xff]
      %v246 = vld [vmem:[%s3 + $0x8] sm:$0xff]
      %v247 = vld [vmem:[%s3 + $0x10] sm:$0xff]
      %v248 = vld [vmem:[%s3 + $0x18] sm:$0xff]
      %v249 = vld [vmem:[%s3 + $0x20] sm:$0xff]
      %v250 = vld [vmem:[%s3 + $0x28] sm:$0xff]
      %vm251 = vcmask 392192
      %v253 = vsel %vm251, %v244, 0
      %255 = vmatprep.subr.mxu0 0.0
      %256 = vmatpush1.msra.mxu0 0.0
      %257 = vmatprep.subr.mxu0 0.0
      %258 = vmatpush1.msra.mxu0 0.0
      %259 = vmatprep.subr.mxu0 0.0
      %260 = vmatpush1.msra.mxu0 0.0
      %261 = vmatprep.subr.mxu0 0.0
      %262 = vmatpush1.msra.mxu0 0.0
      %263 = vmatprep.subr.mxu0 0.0
      %264 = vmatpush1.msra.mxu0 0.0
      %265 = vmatprep.subr.mxu0 0.0
      %266 = vmatpush1.msra.mxu0 0.0
      %267 = vmatprep.subr.mxu0 0.0
      %268 = vmatpush1.msra.mxu0 0.0
      %269 = vmatprep.subr.mxu0 0.0
      %270 = vmatpush1.msra.mxu0 0.0
      %271 = vmatprep.subr.mxu0 0.0
      %272 = vmatpush1.msra.mxu0 0.0
      %273 = vmatprep.subr.mxu0 0.0
      %274 = vmatpush1.msra.mxu0 0.0
      %275 = vmatprep.subr.mxu0 0.0
      %276 = vmatpush1.msra.mxu0 %v250
      %277 = vmatprep.subr.mxu0 0.0
      %278 = vmatpush1.msra.mxu0 %v249
      %279 = vmatprep.subr.mxu0 0.0
      %280 = vmatpush1.msra.mxu0 %v248
      %281 = vmatprep.subr.mxu0 0.0
      %282 = vmatpush1.msra.mxu0 %v247
      %283 = vmatprep.subr.mxu0 0.0
      %284 = vmatpush1.msra.mxu0 %v246
      %285 = vmatprep.subr.mxu0 0.0
      %286 = vmatpush1.msra.mxu0 %v245
      %287 = vmatprep.subr.mxu0 0.0
      %288 = vmatpush2.msra.mxu0 0.0
      %289 = vmatprep.subr.mxu0 0.0
      %290 = vmatpush2.msra.mxu0 0.0
      %291 = vmatprep.subr.mxu0 0.0
      %292 = vmatpush2.msra.mxu0 0.0
      %293 = vmatprep.subr.mxu0 0.0
      %294 = vmatpush2.msra.mxu0 0.0
      %295 = vmatprep.subr.mxu0 0.0
      %296 = vmatpush2.msra.mxu0 0.0
      %297 = vmatprep.subr.mxu0 0.0
      %298 = vmatpush2.msra.mxu0 0.0
      %299 = vmatprep.subr.mxu0 0.0
      %300 = vmatpush2.msra.mxu0 0.0
      %301 = vmatprep.subr.mxu0 0.0
      %302 = vmatpush2.msra.mxu0 0.0
      %303 = vmatprep.subr.mxu0 0.0
      %304 = vmatpush2.msra.mxu0 0.0
      %305 = vmatprep.subr.mxu0 0.0
      %306 = vmatpush2.msra.mxu0 0.0
      %307 = vmatprep.subr.mxu0 0.0
      %308 = vmatpush2.msra.mxu0 0.0
      %309 = vmatprep.subr.mxu0 0.0
      %310 = vmatpush2.msra.mxu0 0.0
      %311 = vmatprep.subr.mxu0 0.0
      %312 = vmatpush2.msra.mxu0 0.0
      %313 = vmatprep.subr.mxu0 0.0
      %314 = vmatpush2.msra.mxu0 0.0
      %315 = vmatprep.subr.mxu0 0.0
      %316 = vmatpush2.msra.mxu0 0.0
      %317 = vmatprep.subr.mxu0 0.0
      %318 = vmatpush2.msra.mxu0 0.0
      %319 = vmatprep.mubr.f32.mxu0 0.0
      %320 = vmatmul.mubr.f32.gmra.mxu0 %v253
      %v321 = vpop.f32.mrf.mxu0
      %v322 = vadd.f32 0.0, %v321
      %v323 = vpop.f32.mrf.mxu0
      %324 = vdwg.mxu0
      %vm325 = vcmask 261120
      %v327 = vsel %vm325, %v239, 0
      %329 = vmatprep.subr.mxu0 0.0
      %330 = vmatpush1.msra.mxu0 0.0
      %331 = vmatprep.subr.mxu0 0.0
      %332 = vmatpush1.msra.mxu0 0.0
      %333 = vmatprep.subr.mxu0 0.0
      %334 = vmatpush1.msra.mxu0 0.0
      %335 = vmatprep.subr.mxu0 0.0
      %336 = vmatpush1.msra.mxu0 0.0
      %337 = vmatprep.subr.mxu0 0.0
      %338 = vmatpush1.msra.mxu0 0.0
      %339 = vmatprep.subr.mxu0 0.0
      %340 = vmatpush1.msra.mxu0 0.0
      %341 = vmatprep.subr.mxu0 0.0
      %342 = vmatpush1.msra.mxu0 0.0
      %343 = vmatprep.subr.mxu0 0.0
      %344 = vmatpush1.msra.mxu0 0.0
      %345 = vmatprep.subr.mxu0 0.0
      %346 = vmatpush1.msra.mxu0 0.0
      %347 = vmatprep.subr.mxu0 0.0
      %348 = vmatpush1.msra.mxu0 0.0
      %349 = vmatprep.subr.mxu0 0.0
      %350 = vmatpush1.msra.mxu0 0.0
      %351 = vmatprep.subr.mxu0 0.0
      %352 = vmatpush1.msra.mxu0 0.0
      %353 = vmatprep.subr.mxu0 0.0
      %354 = vmatpush1.msra.mxu0 %v243
      %355 = vmatprep.subr.mxu0 0.0
      %356 = vmatpush1.msra.mxu0 %v242
      %357 = vmatprep.subr.mxu0 0.0
      %358 = vmatpush1.msra.mxu0 %v241
      %359 = vmatprep.subr.mxu0 0.0
      %360 = vmatpush1.msra.mxu0 %v240
      %361 = vmatprep.subr.mxu0 0.0
      %362 = vmatpush2.msra.mxu0 0.0
      %363 = vmatprep.subr.mxu0 0.0
      %364 = vmatpush2.msra.mxu0 0.0
      %365 = vmatprep.subr.mxu0 0.0
      %366 = vmatpush2.msra.mxu0 0.0
      %367 = vmatprep.subr.mxu0 0.0
      %368 = vmatpush2.msra.mxu0 0.0
      %369 = vmatprep.subr.mxu0 0.0
      %370 = vmatpush2.msra.mxu0 0.0
      %371 = vmatprep.subr.mxu0 0.0
      %372 = vmatpush2.msra.mxu0 0.0
      %373 = vmatprep.subr.mxu0 0.0
      %374 = vmatpush2.msra.mxu0 0.0
      %375 = vmatprep.subr.mxu0 0.0
      %376 = vmatpush2.msra.mxu0 0.0
      %377 = vmatprep.subr.mxu0 0.0
      %378 = vmatpush2.msra.mxu0 0.0
      %379 = vmatprep.subr.mxu0 0.0
      %380 = vmatpush2.msra.mxu0 0.0
      %381 = vmatprep.subr.mxu0 0.0
      %382 = vmatpush2.msra.mxu0 0.0
      %383 = vmatprep.subr.mxu0 0.0
      %384 = vmatpush2.msra.mxu0 0.0
      %385 = vmatprep.subr.mxu0 0.0
      %386 = vmatpush2.msra.mxu0 0.0
      %387 = vmatprep.subr.mxu0 0.0
      %388 = vmatpush2.msra.mxu0 0.0
      %389 = vmatprep.subr.mxu0 0.0
      %390 = vmatpush2.msra.mxu0 0.0
      %391 = vmatprep.subr.mxu0 0.0
      %392 = vmatpush2.msra.mxu0 0.0
      %393 = vmatprep.mubr.f32.mxu0 0.0
      %394 = vmatmul.mubr.f32.gmra.mxu0 %v327
      %v395 = vpop.f32.mrf.mxu0
      %v396 = vadd.f32 %v322, %v395
      %v397 = vpop.f32.mrf.mxu0
      %398 = vdwg.mxu0
      %v399 = vld [vmem:[#allocation2] sm:$0x1]
      %v401 = vlaneseq
      %v402 = vshrl.u32 %v401, 7
      %v403 = vsub.s32 0, %v402
      %v404 = vrot.slane %v399, %v403
      %v406 = vadd.f32 %v396, %v404
      %vm407 = vcmask 7168
      %408 = vst.msk [vmem:[%s238] sm:$0xff] %vm407, %v406
      %p409 = scmp.lt.s32.totalorder %s18, 2
      %s410 = scalar_select %p409, %s18, 2
      %s411 = smul.addr %s410, 8
      %s412 = scalar_lea.vmem %s5, %s411
      // Predicated region
      $region41: #{tpu_custom_call.1} parent=39 // pred_check
        %p413 = pneg %p151
      $region42: #{tpu_custom_call.1} parent=39 // pred_check_branch
        %415 = sbr.rel (%p413) target = $region44
      $region43: #{tpu_custom_call.1} parent=39 // pred_region
        _
      $region44: #{tpu_custom_call.1} parent=39 // pred_fallthru
        _
    $region40: #{tpu_custom_call.1} parent=5 // pred_fallthru
      _
    %p416 = scmp.le.s32.totalorder 2, %s13
    // Predicated region
    $region45: #{tpu_custom_call.1} parent=5 // pred_check
      %p417 = pneg %p416
    $region46: #{tpu_custom_call.1} parent=5 // pred_check_branch
      %419 = sbr.rel (%p417) target = $region48
    $region47: #{tpu_custom_call.1} parent=5 // pred_region
      %s420 = ssub.s32 %s13, 2
      // Predicated region
      $region49: #{tpu_custom_call.1} parent=47 // pred_check
        %p421 = pneg %p157
      $region50: #{tpu_custom_call.1} parent=47 // pred_check_branch
        %423 = sbr.rel (%p421) target = $region52
      $region51: #{tpu_custom_call.1} parent=47 // pred_region
        %p424 = scmp.lt.s32.totalorder %s19, 2
        %s425 = scalar_select %p424, %s19, 2
        %s426 = smul.addr %s425, 8
        %s427 = scalar_lea.vmem %s5, %s426
      $region52: #{tpu_custom_call.1} parent=47 // pred_fallthru
        _
    $region48: #{tpu_custom_call.1} parent=5 // pred_fallthru
      _
  $region6: #{tpu_custom_call.1} parent=0 // loop_footer
    %s17 = sadd.s32 1, %s13
  $region7: #{tpu_custom_call.1} parent=0 // loop_footer_branch
    %12 = sbr.rel target = $region3
  $region8: #{tpu_custom_call.1} parent=0 // loop_exit
    _

</llo_original>
